<compile_context>
chip_gen: v7x
topology: tpu7x:2x2x1
jax: 0.10.0
libtpu: 0.0.40
codegen_flags: <defaults>
</compile_context>

<pallas_src>
import functools

import jax
import jax.numpy as jnp
from jax import lax
from jax.experimental import pallas as pl
from jax.experimental.pallas import tpu as pltpu

_INT32_MIN = -(2**31)  # "removed" sentinel; keys are clamped strictly above it


def _sortable_key(x_f32):
    """Monotone f32 -> int32 map: key(a) < key(b) <=> a < b (finite and +/-inf).

    NaNs with a clear sign bit rank highest (like torch.topk); NaNs with a set
    sign bit rank below -inf (divergence, documented).
    """
    i = pltpu.bitcast(x_f32, jnp.int32)
    # For negative floats flip all non-sign bits so int32 ordering == float ordering.
    return i ^ ((i >> 31) & 0x7FFFFFFF)


def _topk_kernel(x_ref, o_ref, *, k: int, idx_bits: int, unroll):
    x = x_ref[...]                                        # (TB, D), input dtype
    tb, d = x.shape
    xf = x.astype(jnp.float32)                            # f32 compute (v5e: no bf16 VALUs)
    key = _sortable_key(xf)

    if idx_bits > 0:
        # Merged path: the low `idx_bits` of the key carry no value information
        # (bf16/f16 upcast to f32), so pack the reversed column index there.
        # One cross-lane max then yields value AND first-index tie-break at once,
        # and the row maximum is unique -> `work == m` selects exactly one lane.
        col = lax.broadcasted_iota(jnp.int32, (tb, d), 1)
        low = (1 << idx_bits) - 1
        hi_mask = -(1 << idx_bits)
        key = (key & hi_mask) | (low - col)
        key = jnp.maximum(key, _INT32_MIN + 1)            # sentinel is unreachable

        def body(_, work):
            m = jnp.max(work, axis=-1, keepdims=True)     # 1 XLU reduce / iteration
            return jnp.where(work == m, _INT32_MIN, work)
    else:
        # Exact f32 path: row max + first index of the max (2 XLU reduces / iter).
        col = lax.broadcasted_iota(jnp.int32, (tb, d), 1)
        key = jnp.maximum(key, _INT32_MIN + 1)

        def body(_, work):
            m = jnp.max(work, axis=-1, keepdims=True)
            hit = work == m
            idx = jnp.min(jnp.where(hit, col, d), axis=-1, keepdims=True)
            return jnp.where(col == idx, _INT32_MIN, work)

    work = lax.fori_loop(0, k, body, key, unroll=unroll)
    keep = work == _INT32_MIN                             # removed lanes == selected lanes
    o_ref[...] = jnp.where(keep, x, jnp.zeros_like(x))    # keep original values


def _round_up(n, m):
    return ((n + m - 1) // m) * m


def _sublane_multiple(dtype) -> int:
    # Minimum sublane tile: 8 for 32-bit, 16 for 16-bit, 32 for 8-bit dtypes.
    return {4: 8, 2: 16, 1: 32}.get(jnp.dtype(dtype).itemsize, 8)


def _index_pack_bits(dtype, d, allow_approx_f32_ties):
    """How many low bits of the upcast-f32 sortable key are free for the index."""
    need = max(1, (d - 1).bit_length())
    dtype = jnp.dtype(dtype)
    if dtype == jnp.bfloat16:
        free = 16          # bf16 -> f32 leaves the low 16 mantissa bits zero
    elif dtype == jnp.float16:
        free = 13
    elif dtype == jnp.float32 and allow_approx_f32_ties:
        free = 7           # sacrifices tie-break exactness below ~2^-17 relative
    else:
        free = 0
    return need if need <= free else 0


def _choose_block_rows(b, d, sub):
    """Row tile: large enough to amortize ~0.35us/step grid overhead and keep the
    XLU reduce pipeline fed; small enough to fit the scoped-VMEM budget (v7x has
    only 64 MiB total) and to keep the parallel grid multi-step for 2-TC chips."""
    vmem_budget = 24 << 20              # headroom under the 32 MiB scoped default
    live_slabs = 8                      # 2x2 pipeline buffers + in-kernel temporaries (4B each)
    cap = max(sub, (vmem_budget // (live_slabs * 4 * d)) // sub * sub)
    tb = min(128, cap, _round_up(b, sub))
    tb = max(sub, (tb // sub) * sub)
    if tb >= b and b >= 2 * sub:        # keep >= 2 grid steps when the batch allows
        tb = max(sub, _round_up(pl.cdiv(b, 2), sub))
    return tb


def topk_activation(x: jax.Array, k: int, *, block_rows=None,
                    allow_approx_f32_ties: bool = False) -> jax.Array:
    """JAX/Pallas equivalent of TopKActivation.forward for x of shape (batch, latent)."""
    b, d = x.shape
    if k >= d:
        return x
    if k <= 0:
        return jnp.zeros_like(x)

    idx_bits = _index_pack_bits(x.dtype, d, allow_approx_f32_ties)
    sub = _sublane_multiple(x.dtype)
    tb = block_rows if block_rows is not None else _choose_block_rows(b, d, sub)
    tb = max(sub, _round_up(tb, sub))

    bp = _round_up(b, tb)                              # pad ragged batches
    x_in = jnp.pad(x, ((0, bp - b), (0, 0))) if bp != b else x

    kernel = functools.partial(
        _topk_kernel, k=k, idx_bits=idx_bits,
        unroll=True if k <= 32 else 4)

    out = pl.pallas_call(
        kernel,
        out_shape=jax.ShapeDtypeStruct((bp, d), x.dtype),
        grid_spec=pltpu.PrefetchScalarGridSpec(
            num_scalar_prefetch=0,
            grid=(bp // tb,),
            in_specs=[pl.BlockSpec((tb, d), lambda i: (i, 0))],
            out_specs=pl.BlockSpec((tb, d), lambda i: (i, 0)),
        ),
        compiler_params=pltpu.CompilerParams(
            dimension_semantics=("parallel",)),
    )(x_in)

    return out[:b] if bp != b else out


def _reference_topk(x: jax.Array, k: int) -> jax.Array:
    """Plain-JAX reference (mirrors torch.topk + scatter_)."""
    if k >= x.shape[1]:
        return x
    vals, idx = lax.top_k(x, k)
    rows = jnp.arange(x.shape[0])[:, None]
    return jnp.zeros_like(x).at[rows, idx].set(vals)


if __name__ == "__main__":
    key = jax.random.PRNGKey(0)

    # 1) f32, exact tie-break path (value max + first-index reduce per element).
    batch, latent_dim, k = 8, 128, 16
    x = jax.random.normal(key, (batch, latent_dim), dtype=jnp.float32)
    out = jax.block_until_ready(topk_activation(x, k))
    ref = _reference_topk(x, k)
    assert out.shape == x.shape and out.dtype == x.dtype
    assert bool(jnp.allclose(out, ref)), "f32 mismatch vs. reference top-k"

    # 2) bf16, merged single-reduction path (index packed into the key's low bits).
    b2, d2, k2 = 32, 256, 8
    base = jnp.arange(d2, dtype=jnp.float32)           # distinct, exact in bf16
    keys2 = jax.random.split(key, b2)
    xb = jax.vmap(lambda kk: jax.random.permutation(kk, base))(keys2).astype(jnp.bfloat16)
    outb = jax.block_until_ready(topk_activation(xb, k2))
    expb = jnp.where(xb >= (d2 - k2), xb, jnp.zeros_like(xb))
    assert outb.dtype == xb.dtype
    assert bool(jnp.array_equal(outb, expb)), "bf16 mismatch vs. expected top-k"

    print("KERNEL_OK")
</pallas_src>

<mosaic_0001>
module attributes {stable_mosaic.version = 11 : i64} {
  func.func @_topk_kernel(%arg0: i32, %arg1: memref<8x128xf32, #tpu.memory_space<vmem>>, %arg2: memref<8x128xf32, #tpu.memory_space<vmem>>) attributes {dimension_semantics = [#tpu.dimension_semantics<parallel>], iteration_bounds = array<i64: 1>, scalar_prefetch = 0 : i64, scratch_operands = 0 : i64, tpu.core_type = #tpu.core_type<tc>, window_params = [{transform_indices = @transform_0, window_bounds = array<i64: 8, 128>}, {transform_indices = @transform_1, window_bounds = array<i64: 8, 128>}]} {
    %c0 = arith.constant 0 : index
    %c0_0 = arith.constant 0 : index
    %0 = vector.load %arg1[%c0, %c0_0] : memref<8x128xf32, #tpu.memory_space<vmem>>, vector<8x128xf32>
    %1 = tpu.bitcast %0 : vector<8x128xf32> -> vector<8x128xi32>
    %c31_i32 = arith.constant 31 : i32
    %2 = vector.broadcast %c31_i32 : i32 to vector<8x128xi32>
    %3 = arith.shrsi %1, %2 : vector<8x128xi32>
    %c2147483647_i32 = arith.constant 2147483647 : i32
    %4 = vector.broadcast %c2147483647_i32 : i32 to vector<8x128xi32>
    %5 = arith.andi %3, %4 : vector<8x128xi32>
    %6 = arith.xori %1, %5 : vector<8x128xi32>
    %7 = tpu.iota {dimensions = array<i32: 1>} : vector<8x128xi32>
    %c-2147483647_i32 = arith.constant -2147483647 : i32
    %8 = vector.broadcast %c-2147483647_i32 : i32 to vector<8x128xi32>
    %9 = arith.maxsi %6, %8 : vector<8x128xi32>
    %c0_i32 = arith.constant 0 : i32
    %cst = arith.constant dense<-2147483648> : vector<8xi32>
    %10 = vector.multi_reduction <maxsi>, %9, %cst [1] : vector<8x128xi32> to vector<8xi32>
    %11 = vector.shape_cast %10 : vector<8xi32> to vector<8x1xi32>
    %12 = vector.broadcast %11 : vector<8x1xi32> to vector<8x128xi32>
    %13 = arith.cmpi eq, %9, %12 : vector<8x128xi32>
    %c128_i32 = arith.constant 128 : i32
    %14 = vector.broadcast %c128_i32 : i32 to vector<8x128xi32>
    %15 = arith.select %13, %7, %14 : vector<8x128xi1>, vector<8x128xi32>
    %cst_1 = arith.constant dense<2147483647> : vector<8xi32>
    %16 = vector.multi_reduction <minsi>, %15, %cst_1 [1] : vector<8x128xi32> to vector<8xi32>
    %17 = vector.shape_cast %16 : vector<8xi32> to vector<8x1xi32>
    %18 = vector.broadcast %17 : vector<8x1xi32> to vector<8x128xi32>
    %19 = arith.cmpi eq, %7, %18 : vector<8x128xi32>
    %c-2147483648_i32 = arith.constant -2147483648 : i32
    %20 = vector.broadcast %c-2147483648_i32 : i32 to vector<8x128xi32>
    %21 = arith.select %19, %20, %9 : vector<8x128xi1>, vector<8x128xi32>
    %c1_i32 = arith.constant 1 : i32
    %cst_2 = arith.constant dense<-2147483648> : vector<8xi32>
    %22 = vector.multi_reduction <maxsi>, %21, %cst_2 [1] : vector<8x128xi32> to vector<8xi32>
    %23 = vector.shape_cast %22 : vector<8xi32> to vector<8x1xi32>
    %24 = vector.broadcast %23 : vector<8x1xi32> to vector<8x128xi32>
    %25 = arith.cmpi eq, %21, %24 : vector<8x128xi32>
    %c128_i32_3 = arith.constant 128 : i32
    %26 = vector.broadcast %c128_i32_3 : i32 to vector<8x128xi32>
    %27 = arith.select %25, %7, %26 : vector<8x128xi1>, vector<8x128xi32>
    %cst_4 = arith.constant dense<2147483647> : vector<8xi32>
    %28 = vector.multi_reduction <minsi>, %27, %cst_4 [1] : vector<8x128xi32> to vector<8xi32>
    %29 = vector.shape_cast %28 : vector<8xi32> to vector<8x1xi32>
    %30 = vector.broadcast %29 : vector<8x1xi32> to vector<8x128xi32>
    %31 = arith.cmpi eq, %7, %30 : vector<8x128xi32>
    %c-2147483648_i32_5 = arith.constant -2147483648 : i32
    %32 = vector.broadcast %c-2147483648_i32_5 : i32 to vector<8x128xi32>
    %33 = arith.select %31, %32, %21 : vector<8x128xi1>, vector<8x128xi32>
    %c2_i32 = arith.constant 2 : i32
    %cst_6 = arith.constant dense<-2147483648> : vector<8xi32>
    %34 = vector.multi_reduction <maxsi>, %33, %cst_6 [1] : vector<8x128xi32> to vector<8xi32>
    %35 = vector.shape_cast %34 : vector<8xi32> to vector<8x1xi32>
    %36 = vector.broadcast %35 : vector<8x1xi32> to vector<8x128xi32>
    %37 = arith.cmpi eq, %33, %36 : vector<8x128xi32>
    %c128_i32_7 = arith.constant 128 : i32
    %38 = vector.broadcast %c128_i32_7 : i32 to vector<8x128xi32>
    %39 = arith.select %37, %7, %38 : vector<8x128xi1>, vector<8x128xi32>
    %cst_8 = arith.constant dense<2147483647> : vector<8xi32>
    %40 = vector.multi_reduction <minsi>, %39, %cst_8 [1] : vector<8x128xi32> to vector<8xi32>
    %41 = vector.shape_cast %40 : vector<8xi32> to vector<8x1xi32>
    %42 = vector.broadcast %41 : vector<8x1xi32> to vector<8x128xi32>
    %43 = arith.cmpi eq, %7, %42 : vector<8x128xi32>
    %c-2147483648_i32_9 = arith.constant -2147483648 : i32
    %44 = vector.broadcast %c-2147483648_i32_9 : i32 to vector<8x128xi32>
    %45 = arith.select %43, %44, %33 : vector<8x128xi1>, vector<8x128xi32>
    %c3_i32 = arith.constant 3 : i32
    %cst_10 = arith.constant dense<-2147483648> : vector<8xi32>
    %46 = vector.multi_reduction <maxsi>, %45, %cst_10 [1] : vector<8x128xi32> to vector<8xi32>
    %47 = vector.shape_cast %46 : vector<8xi32> to vector<8x1xi32>
    %48 = vector.broadcast %47 : vector<8x1xi32> to vector<8x128xi32>
    %49 = arith.cmpi eq, %45, %48 : vector<8x128xi32>
    %c128_i32_11 = arith.constant 128 : i32
    %50 = vector.broadcast %c128_i32_11 : i32 to vector<8x128xi32>
    %51 = arith.select %49, %7, %50 : vector<8x128xi1>, vector<8x128xi32>
    %cst_12 = arith.constant dense<2147483647> : vector<8xi32>
    %52 = vector.multi_reduction <minsi>, %51, %cst_12 [1] : vector<8x128xi32> to vector<8xi32>
    %53 = vector.shape_cast %52 : vector<8xi32> to vector<8x1xi32>
    %54 = vector.broadcast %53 : vector<8x1xi32> to vector<8x128xi32>
    %55 = arith.cmpi eq, %7, %54 : vector<8x128xi32>
    %c-2147483648_i32_13 = arith.constant -2147483648 : i32
    %56 = vector.broadcast %c-2147483648_i32_13 : i32 to vector<8x128xi32>
    %57 = arith.select %55, %56, %45 : vector<8x128xi1>, vector<8x128xi32>
    %c4_i32 = arith.constant 4 : i32
    %cst_14 = arith.constant dense<-2147483648> : vector<8xi32>
    %58 = vector.multi_reduction <maxsi>, %57, %cst_14 [1] : vector<8x128xi32> to vector<8xi32>
    %59 = vector.shape_cast %58 : vector<8xi32> to vector<8x1xi32>
    %60 = vector.broadcast %59 : vector<8x1xi32> to vector<8x128xi32>
    %61 = arith.cmpi eq, %57, %60 : vector<8x128xi32>
    %c128_i32_15 = arith.constant 128 : i32
    %62 = vector.broadcast %c128_i32_15 : i32 to vector<8x128xi32>
    %63 = arith.select %61, %7, %62 : vector<8x128xi1>, vector<8x128xi32>
    %cst_16 = arith.constant dense<2147483647> : vector<8xi32>
    %64 = vector.multi_reduction <minsi>, %63, %cst_16 [1] : vector<8x128xi32> to vector<8xi32>
    %65 = vector.shape_cast %64 : vector<8xi32> to vector<8x1xi32>
    %66 = vector.broadcast %65 : vector<8x1xi32> to vector<8x128xi32>
    %67 = arith.cmpi eq, %7, %66 : vector<8x128xi32>
    %c-2147483648_i32_17 = arith.constant -2147483648 : i32
    %68 = vector.broadcast %c-2147483648_i32_17 : i32 to vector<8x128xi32>
    %69 = arith.select %67, %68, %57 : vector<8x128xi1>, vector<8x128xi32>
    %c5_i32 = arith.constant 5 : i32
    %cst_18 = arith.constant dense<-2147483648> : vector<8xi32>
    %70 = vector.multi_reduction <maxsi>, %69, %cst_18 [1] : vector<8x128xi32> to vector<8xi32>
    %71 = vector.shape_cast %70 : vector<8xi32> to vector<8x1xi32>
    %72 = vector.broadcast %71 : vector<8x1xi32> to vector<8x128xi32>
    %73 = arith.cmpi eq, %69, %72 : vector<8x128xi32>
    %c128_i32_19 = arith.constant 128 : i32
    %74 = vector.broadcast %c128_i32_19 : i32 to vector<8x128xi32>
    %75 = arith.select %73, %7, %74 : vector<8x128xi1>, vector<8x128xi32>
    %cst_20 = arith.constant dense<2147483647> : vector<8xi32>
    %76 = vector.multi_reduction <minsi>, %75, %cst_20 [1] : vector<8x128xi32> to vector<8xi32>
    %77 = vector.shape_cast %76 : vector<8xi32> to vector<8x1xi32>
    %78 = vector.broadcast %77 : vector<8x1xi32> to vector<8x128xi32>
    %79 = arith.cmpi eq, %7, %78 : vector<8x128xi32>
    %c-2147483648_i32_21 = arith.constant -2147483648 : i32
    %80 = vector.broadcast %c-2147483648_i32_21 : i32 to vector<8x128xi32>
    %81 = arith.select %79, %80, %69 : vector<8x128xi1>, vector<8x128xi32>
    %c6_i32 = arith.constant 6 : i32
    %cst_22 = arith.constant dense<-2147483648> : vector<8xi32>
    %82 = vector.multi_reduction <maxsi>, %81, %cst_22 [1] : vector<8x128xi32> to vector<8xi32>
    %83 = vector.shape_cast %82 : vector<8xi32> to vector<8x1xi32>
    %84 = vector.broadcast %83 : vector<8x1xi32> to vector<8x128xi32>
    %85 = arith.cmpi eq, %81, %84 : vector<8x128xi32>
    %c128_i32_23 = arith.constant 128 : i32
    %86 = vector.broadcast %c128_i32_23 : i32 to vector<8x128xi32>
    %87 = arith.select %85, %7, %86 : vector<8x128xi1>, vector<8x128xi32>
    %cst_24 = arith.constant dense<2147483647> : vector<8xi32>
    %88 = vector.multi_reduction <minsi>, %87, %cst_24 [1] : vector<8x128xi32> to vector<8xi32>
    %89 = vector.shape_cast %88 : vector<8xi32> to vector<8x1xi32>
    %90 = vector.broadcast %89 : vector<8x1xi32> to vector<8x128xi32>
    %91 = arith.cmpi eq, %7, %90 : vector<8x128xi32>
    %c-2147483648_i32_25 = arith.constant -2147483648 : i32
    %92 = vector.broadcast %c-2147483648_i32_25 : i32 to vector<8x128xi32>
    %93 = arith.select %91, %92, %81 : vector<8x128xi1>, vector<8x128xi32>
    %c7_i32 = arith.constant 7 : i32
    %cst_26 = arith.constant dense<-2147483648> : vector<8xi32>
    %94 = vector.multi_reduction <maxsi>, %93, %cst_26 [1] : vector<8x128xi32> to vector<8xi32>
    %95 = vector.shape_cast %94 : vector<8xi32> to vector<8x1xi32>
    %96 = vector.broadcast %95 : vector<8x1xi32> to vector<8x128xi32>
    %97 = arith.cmpi eq, %93, %96 : vector<8x128xi32>
    %c128_i32_27 = arith.constant 128 : i32
    %98 = vector.broadcast %c128_i32_27 : i32 to vector<8x128xi32>
    %99 = arith.select %97, %7, %98 : vector<8x128xi1>, vector<8x128xi32>
    %cst_28 = arith.constant dense<2147483647> : vector<8xi32>
    %100 = vector.multi_reduction <minsi>, %99, %cst_28 [1] : vector<8x128xi32> to vector<8xi32>
    %101 = vector.shape_cast %100 : vector<8xi32> to vector<8x1xi32>
    %102 = vector.broadcast %101 : vector<8x1xi32> to vector<8x128xi32>
    %103 = arith.cmpi eq, %7, %102 : vector<8x128xi32>
    %c-2147483648_i32_29 = arith.constant -2147483648 : i32
    %104 = vector.broadcast %c-2147483648_i32_29 : i32 to vector<8x128xi32>
    %105 = arith.select %103, %104, %93 : vector<8x128xi1>, vector<8x128xi32>
    %c8_i32 = arith.constant 8 : i32
    %cst_30 = arith.constant dense<-2147483648> : vector<8xi32>
    %106 = vector.multi_reduction <maxsi>, %105, %cst_30 [1] : vector<8x128xi32> to vector<8xi32>
    %107 = vector.shape_cast %106 : vector<8xi32> to vector<8x1xi32>
    %108 = vector.broadcast %107 : vector<8x1xi32> to vector<8x128xi32>
    %109 = arith.cmpi eq, %105, %108 : vector<8x128xi32>
    %c128_i32_31 = arith.constant 128 : i32
    %110 = vector.broadcast %c128_i32_31 : i32 to vector<8x128xi32>
    %111 = arith.select %109, %7, %110 : vector<8x128xi1>, vector<8x128xi32>
    %cst_32 = arith.constant dense<2147483647> : vector<8xi32>
    %112 = vector.multi_reduction <minsi>, %111, %cst_32 [1] : vector<8x128xi32> to vector<8xi32>
    %113 = vector.shape_cast %112 : vector<8xi32> to vector<8x1xi32>
    %114 = vector.broadcast %113 : vector<8x1xi32> to vector<8x128xi32>
    %115 = arith.cmpi eq, %7, %114 : vector<8x128xi32>
    %c-2147483648_i32_33 = arith.constant -2147483648 : i32
    %116 = vector.broadcast %c-2147483648_i32_33 : i32 to vector<8x128xi32>
    %117 = arith.select %115, %116, %105 : vector<8x128xi1>, vector<8x128xi32>
    %c9_i32 = arith.constant 9 : i32
    %cst_34 = arith.constant dense<-2147483648> : vector<8xi32>
    %118 = vector.multi_reduction <maxsi>, %117, %cst_34 [1] : vector<8x128xi32> to vector<8xi32>
    %119 = vector.shape_cast %118 : vector<8xi32> to vector<8x1xi32>
    %120 = vector.broadcast %119 : vector<8x1xi32> to vector<8x128xi32>
    %121 = arith.cmpi eq, %117, %120 : vector<8x128xi32>
    %c128_i32_35 = arith.constant 128 : i32
    %122 = vector.broadcast %c128_i32_35 : i32 to vector<8x128xi32>
    %123 = arith.select %121, %7, %122 : vector<8x128xi1>, vector<8x128xi32>
    %cst_36 = arith.constant dense<2147483647> : vector<8xi32>
    %124 = vector.multi_reduction <minsi>, %123, %cst_36 [1] : vector<8x128xi32> to vector<8xi32>
    %125 = vector.shape_cast %124 : vector<8xi32> to vector<8x1xi32>
    %126 = vector.broadcast %125 : vector<8x1xi32> to vector<8x128xi32>
    %127 = arith.cmpi eq, %7, %126 : vector<8x128xi32>
    %c-2147483648_i32_37 = arith.constant -2147483648 : i32
    %128 = vector.broadcast %c-2147483648_i32_37 : i32 to vector<8x128xi32>
    %129 = arith.select %127, %128, %117 : vector<8x128xi1>, vector<8x128xi32>
    %c10_i32 = arith.constant 10 : i32
    %cst_38 = arith.constant dense<-2147483648> : vector<8xi32>
    %130 = vector.multi_reduction <maxsi>, %129, %cst_38 [1] : vector<8x128xi32> to vector<8xi32>
    %131 = vector.shape_cast %130 : vector<8xi32> to vector<8x1xi32>
    %132 = vector.broadcast %131 : vector<8x1xi32> to vector<8x128xi32>
    %133 = arith.cmpi eq, %129, %132 : vector<8x128xi32>
    %c128_i32_39 = arith.constant 128 : i32
    %134 = vector.broadcast %c128_i32_39 : i32 to vector<8x128xi32>
    %135 = arith.select %133, %7, %134 : vector<8x128xi1>, vector<8x128xi32>
    %cst_40 = arith.constant dense<2147483647> : vector<8xi32>
    %136 = vector.multi_reduction <minsi>, %135, %cst_40 [1] : vector<8x128xi32> to vector<8xi32>
    %137 = vector.shape_cast %136 : vector<8xi32> to vector<8x1xi32>
    %138 = vector.broadcast %137 : vector<8x1xi32> to vector<8x128xi32>
    %139 = arith.cmpi eq, %7, %138 : vector<8x128xi32>
    %c-2147483648_i32_41 = arith.constant -2147483648 : i32
    %140 = vector.broadcast %c-2147483648_i32_41 : i32 to vector<8x128xi32>
    %141 = arith.select %139, %140, %129 : vector<8x128xi1>, vector<8x128xi32>
    %c11_i32 = arith.constant 11 : i32
    %cst_42 = arith.constant dense<-2147483648> : vector<8xi32>
    %142 = vector.multi_reduction <maxsi>, %141, %cst_42 [1] : vector<8x128xi32> to vector<8xi32>
    %143 = vector.shape_cast %142 : vector<8xi32> to vector<8x1xi32>
    %144 = vector.broadcast %143 : vector<8x1xi32> to vector<8x128xi32>
    %145 = arith.cmpi eq, %141, %144 : vector<8x128xi32>
    %c128_i32_43 = arith.constant 128 : i32
    %146 = vector.broadcast %c128_i32_43 : i32 to vector<8x128xi32>
    %147 = arith.select %145, %7, %146 : vector<8x128xi1>, vector<8x128xi32>
    %cst_44 = arith.constant dense<2147483647> : vector<8xi32>
    %148 = vector.multi_reduction <minsi>, %147, %cst_44 [1] : vector<8x128xi32> to vector<8xi32>
    %149 = vector.shape_cast %148 : vector<8xi32> to vector<8x1xi32>
    %150 = vector.broadcast %149 : vector<8x1xi32> to vector<8x128xi32>
    %151 = arith.cmpi eq, %7, %150 : vector<8x128xi32>
    %c-2147483648_i32_45 = arith.constant -2147483648 : i32
    %152 = vector.broadcast %c-2147483648_i32_45 : i32 to vector<8x128xi32>
    %153 = arith.select %151, %152, %141 : vector<8x128xi1>, vector<8x128xi32>
    %c12_i32 = arith.constant 12 : i32
    %cst_46 = arith.constant dense<-2147483648> : vector<8xi32>
    %154 = vector.multi_reduction <maxsi>, %153, %cst_46 [1] : vector<8x128xi32> to vector<8xi32>
    %155 = vector.shape_cast %154 : vector<8xi32> to vector<8x1xi32>
    %156 = vector.broadcast %155 : vector<8x1xi32> to vector<8x128xi32>
    %157 = arith.cmpi eq, %153, %156 : vector<8x128xi32>
    %c128_i32_47 = arith.constant 128 : i32
    %158 = vector.broadcast %c128_i32_47 : i32 to vector<8x128xi32>
    %159 = arith.select %157, %7, %158 : vector<8x128xi1>, vector<8x128xi32>
    %cst_48 = arith.constant dense<2147483647> : vector<8xi32>
    %160 = vector.multi_reduction <minsi>, %159, %cst_48 [1] : vector<8x128xi32> to vector<8xi32>
    %161 = vector.shape_cast %160 : vector<8xi32> to vector<8x1xi32>
    %162 = vector.broadcast %161 : vector<8x1xi32> to vector<8x128xi32>
    %163 = arith.cmpi eq, %7, %162 : vector<8x128xi32>
    %c-2147483648_i32_49 = arith.constant -2147483648 : i32
    %164 = vector.broadcast %c-2147483648_i32_49 : i32 to vector<8x128xi32>
    %165 = arith.select %163, %164, %153 : vector<8x128xi1>, vector<8x128xi32>
    %c13_i32 = arith.constant 13 : i32
    %cst_50 = arith.constant dense<-2147483648> : vector<8xi32>
    %166 = vector.multi_reduction <maxsi>, %165, %cst_50 [1] : vector<8x128xi32> to vector<8xi32>
    %167 = vector.shape_cast %166 : vector<8xi32> to vector<8x1xi32>
    %168 = vector.broadcast %167 : vector<8x1xi32> to vector<8x128xi32>
    %169 = arith.cmpi eq, %165, %168 : vector<8x128xi32>
    %c128_i32_51 = arith.constant 128 : i32
    %170 = vector.broadcast %c128_i32_51 : i32 to vector<8x128xi32>
    %171 = arith.select %169, %7, %170 : vector<8x128xi1>, vector<8x128xi32>
    %cst_52 = arith.constant dense<2147483647> : vector<8xi32>
    %172 = vector.multi_reduction <minsi>, %171, %cst_52 [1] : vector<8x128xi32> to vector<8xi32>
    %173 = vector.shape_cast %172 : vector<8xi32> to vector<8x1xi32>
    %174 = vector.broadcast %173 : vector<8x1xi32> to vector<8x128xi32>
    %175 = arith.cmpi eq, %7, %174 : vector<8x128xi32>
    %c-2147483648_i32_53 = arith.constant -2147483648 : i32
    %176 = vector.broadcast %c-2147483648_i32_53 : i32 to vector<8x128xi32>
    %177 = arith.select %175, %176, %165 : vector<8x128xi1>, vector<8x128xi32>
    %c14_i32 = arith.constant 14 : i32
    %cst_54 = arith.constant dense<-2147483648> : vector<8xi32>
    %178 = vector.multi_reduction <maxsi>, %177, %cst_54 [1] : vector<8x128xi32> to vector<8xi32>
    %179 = vector.shape_cast %178 : vector<8xi32> to vector<8x1xi32>
    %180 = vector.broadcast %179 : vector<8x1xi32> to vector<8x128xi32>
    %181 = arith.cmpi eq, %177, %180 : vector<8x128xi32>
    %c128_i32_55 = arith.constant 128 : i32
    %182 = vector.broadcast %c128_i32_55 : i32 to vector<8x128xi32>
    %183 = arith.select %181, %7, %182 : vector<8x128xi1>, vector<8x128xi32>
    %cst_56 = arith.constant dense<2147483647> : vector<8xi32>
    %184 = vector.multi_reduction <minsi>, %183, %cst_56 [1] : vector<8x128xi32> to vector<8xi32>
    %185 = vector.shape_cast %184 : vector<8xi32> to vector<8x1xi32>
    %186 = vector.broadcast %185 : vector<8x1xi32> to vector<8x128xi32>
    %187 = arith.cmpi eq, %7, %186 : vector<8x128xi32>
    %c-2147483648_i32_57 = arith.constant -2147483648 : i32
    %188 = vector.broadcast %c-2147483648_i32_57 : i32 to vector<8x128xi32>
    %189 = arith.select %187, %188, %177 : vector<8x128xi1>, vector<8x128xi32>
    %c15_i32 = arith.constant 15 : i32
    %cst_58 = arith.constant dense<-2147483648> : vector<8xi32>
    %190 = vector.multi_reduction <maxsi>, %189, %cst_58 [1] : vector<8x128xi32> to vector<8xi32>
    %191 = vector.shape_cast %190 : vector<8xi32> to vector<8x1xi32>
    %192 = vector.broadcast %191 : vector<8x1xi32> to vector<8x128xi32>
    %193 = arith.cmpi eq, %189, %192 : vector<8x128xi32>
    %c128_i32_59 = arith.constant 128 : i32
    %194 = vector.broadcast %c128_i32_59 : i32 to vector<8x128xi32>
    %195 = arith.select %193, %7, %194 : vector<8x128xi1>, vector<8x128xi32>
    %cst_60 = arith.constant dense<2147483647> : vector<8xi32>
    %196 = vector.multi_reduction <minsi>, %195, %cst_60 [1] : vector<8x128xi32> to vector<8xi32>
    %197 = vector.shape_cast %196 : vector<8xi32> to vector<8x1xi32>
    %198 = vector.broadcast %197 : vector<8x1xi32> to vector<8x128xi32>
    %199 = arith.cmpi eq, %7, %198 : vector<8x128xi32>
    %c-2147483648_i32_61 = arith.constant -2147483648 : i32
    %200 = vector.broadcast %c-2147483648_i32_61 : i32 to vector<8x128xi32>
    %201 = arith.select %199, %200, %189 : vector<8x128xi1>, vector<8x128xi32>
    %c-2147483648_i32_62 = arith.constant -2147483648 : i32
    %202 = vector.broadcast %c-2147483648_i32_62 : i32 to vector<8x128xi32>
    %203 = arith.cmpi eq, %201, %202 : vector<8x128xi32>
    %cst_63 = arith.constant 0.000000e+00 : f32
    %204 = vector.broadcast %cst_63 : f32 to vector<8x128xf32>
    %205 = arith.select %203, %0, %204 : vector<8x128xi1>, vector<8x128xf32>
    %c0_64 = arith.constant 0 : index
    %c0_65 = arith.constant 0 : index
    %206 = vector.load %arg2[%c0_64, %c0_65] : memref<8x128xf32, #tpu.memory_space<vmem>>, vector<8x128xf32>
    tpu.vector_store %arg2[%c0_64, %c0_65], %205 {strides = array<i32>} : memref<8x128xf32, #tpu.memory_space<vmem>>, vector<8x128xf32>,
    return
  }
  func.func @transform_0(%arg0: i32) -> (i32, i32) {
    %c0_i32 = arith.constant 0 : i32
    %c0_i32_0 = arith.constant 0 : i32
    return %arg0, %c0_i32 : i32, i32
  }
  func.func @transform_1(%arg0: i32) -> (i32, i32) {
    %c0_i32 = arith.constant 0 : i32
    %c0_i32_0 = arith.constant 0 : i32
    return %arg0, %c0_i32 : i32, i32
  }
}

</mosaic_0001>

<llo_original>
// kernel: tpu_custom_call.1
$region0: #{tpu_custom_call.1}
  #allocation0 [shape = 'u32[]', space=smem, size = 0x4, offset = 0x4, fixed_abs, tag = 'smem constant byte address 0x4 - core index']
  #allocation1 [shape = 'u32[144,128]{1,0:T(1,128)}', space=vmem, size = 0x12000, scoped, tag = 'internal scratch']
  %s0 = inlined_call_operand.hbm [shape: f32[8,128], index: 0, kind: input, shape index: {}]
  %s1 = inlined_call_operand.hbm [shape: f32[8,128], index: 1, kind: output, shape index: {}]
  %s2 = sld [smem:[#allocation0]]
  $region18: #{tpu_custom_call.1} parent=0
    _
  %s4 = ssub.s32 1, %s2
  %s5 = scalar_select 0, %s4, %s2
  $region1: #{tpu_custom_call.1} parent=0
    #allocation2 [shape = 'u8[4096]{0}', space=vmem, size = 0x1000, scoped, tag = 'input window, operand 0, single buffered']
    #allocation3 [shape = 's32[1]{0}', space=sflag, size = 0x4, scoped, tag = 'scoped memory for tpu_custom_call.1']
    #allocation4 [shape = 's32[1]{0}', space=sflag, size = 0x4, scoped, tag = 'scoped memory for tpu_custom_call.1']
    #allocation5 [shape = 'u8[4096]{0}', space=vmem, size = 0x1000, scoped, tag = 'output window, operand 0, single buffered']
    %6 = vsyncpa [#allocation3], 0
    %7 = vsyncpa [#allocation4], 0
    // Predicated region
    $region2: #{tpu_custom_call.1} parent=1 // pred_check
      _
    $region3: #{tpu_custom_call.1} parent=1 // pred_check_branch
      %9 = sbr.rel (0) target = $region5
    $region4: #{tpu_custom_call.1} parent=1 // pred_region
      %s11 = ssub.s32 128, 128
      %12 = vsyncadd [#allocation3], %s11
      %s14 = sshll.u32 [#allocation2], 4
      %s15 = int_to_ptr.vmem [resolvable:$true] %s14
      %17 = dma.hbm_to_vmem [thread:$0]  %s0, 128, %s15, [#allocation3]
    $region5: #{tpu_custom_call.1} parent=1 // pred_fallthru
      _
    // Predicated region
    $region6: #{tpu_custom_call.1} parent=1 // pred_check
      _
    $region7: #{tpu_custom_call.1} parent=1 // pred_check_branch
      %19 = sbr.rel (0) target = $region9
    $region8: #{tpu_custom_call.1} parent=1 // pred_region
      %20 = dma.done [#allocation3], 128
    $region9: #{tpu_custom_call.1} parent=1 // pred_fallthru
      _
    %v21 = vld [vmem:[#allocation2] sm:$0xff]
    %v23 = vshra.s32 %v21, 31
    %v24 = vand.u32 %v23, 2147483647
    %v25 = vxor.u32 %v21, %v24
    %v26 = vlaneseq
    %v27 = vand.u32 %v26, 127
    %vm28 = vcmp.gt.s32.totalorder %v25, 2147483649
    %v29 = vsel %vm28, %v25, 2147483649
    %v30 = vand.u32 %v29, 65535
    %v31 = vshra.s32 %v29, 16
    %v32 = vcvt.s32.f32 %v30
    %v33 = vcvt.s32.f32 %v31
    %34 = vmax.xlane.f32.xlu0 %v33
    %v35 = vpop.xlane.xlu0 %34
    %vm36 = vcmp.eq.f32.partialorder %v33, %v35
    %v37 = vsel %vm36, %v32, -inf
    %38 = vmax.xlane.f32.xlu0 %v37
    %v39 = vpop.xlane.xlu0 %38
    %v40 = vcvt.f32.s32 %v39
    %v41 = vcvt.f32.s32 %v35
    %v42 = vshll.u32 %v41, 16
    %v43 = vadd.s32 %v42, %v40
    %vm44 = vcmp.eq.s32.totalorder %v29, %v43
    %v45 = vsel %vm44, %v27, 128
    %v46 = vand.u32 %v45, 65535
    %v47 = vshra.s32 %v45, 16
    %v48 = vcvt.s32.f32 %v46
    %v49 = vcvt.s32.f32 %v47
    %50 = vmin.xlane.f32.xlu0 %v49
    %v51 = vpop.xlane.xlu0 %50
    %vm52 = vcmp.eq.f32.partialorder %v49, %v51
    %v53 = vsel %vm52, %v48, inf
    %54 = vmin.xlane.f32.xlu0 %v53
    %v55 = vpop.xlane.xlu0 %54
    %v56 = vcvt.f32.s32 %v55
    %v57 = vcvt.f32.s32 %v51
    %v58 = vshll.u32 %v57, 16
    %v59 = vadd.s32 %v58, %v56
    %vm60 = vcmp.eq.s32.totalorder %v27, %v59
    %v61 = vsel %vm60, 2147483648, %v29
    %v62 = vand.u32 %v61, 65535
    %v63 = vshra.s32 %v61, 16
    %v64 = vcvt.s32.f32 %v62
    %v65 = vcvt.s32.f32 %v63
    %66 = vmax.xlane.f32.xlu0 %v65
    %v67 = vpop.xlane.xlu0 %66
    %vm68 = vcmp.eq.f32.partialorder %v65, %v67
    %v69 = vsel %vm68, %v64, -inf
    %70 = vmax.xlane.f32.xlu0 %v69
    %v71 = vpop.xlane.xlu0 %70
    %v72 = vcvt.f32.s32 %v71
    %v73 = vcvt.f32.s32 %v67
    %v74 = vshll.u32 %v73, 16
    %v75 = vadd.s32 %v74, %v72
    %vm76 = vcmp.eq.s32.totalorder %v61, %v75
    %v77 = vsel %vm76, %v27, 128
    %v78 = vand.u32 %v77, 65535
    %v79 = vshra.s32 %v77, 16
    %v80 = vcvt.s32.f32 %v78
    %v81 = vcvt.s32.f32 %v79
    %82 = vmin.xlane.f32.xlu0 %v81
    %v83 = vpop.xlane.xlu0 %82
    %vm84 = vcmp.eq.f32.partialorder %v81, %v83
    %v85 = vsel %vm84, %v80, inf
    %86 = vmin.xlane.f32.xlu0 %v85
    %v87 = vpop.xlane.xlu0 %86
    %v88 = vcvt.f32.s32 %v87
    %v89 = vcvt.f32.s32 %v83
    %v90 = vshll.u32 %v89, 16
    %v91 = vadd.s32 %v90, %v88
    %vm92 = vcmp.eq.s32.totalorder %v27, %v91
    %v93 = vsel %vm92, 2147483648, %v61
    %v94 = vand.u32 %v93, 65535
    %v95 = vshra.s32 %v93, 16
    %v96 = vcvt.s32.f32 %v94
    %v97 = vcvt.s32.f32 %v95
    %98 = vmax.xlane.f32.xlu0 %v97
    %v99 = vpop.xlane.xlu0 %98
    %vm100 = vcmp.eq.f32.partialorder %v97, %v99
    %v101 = vsel %vm100, %v96, -inf
    %102 = vmax.xlane.f32.xlu0 %v101
    %v103 = vpop.xlane.xlu0 %102
    %v104 = vcvt.f32.s32 %v103
    %v105 = vcvt.f32.s32 %v99
    %v106 = vshll.u32 %v105, 16
    %v107 = vadd.s32 %v106, %v104
    %vm108 = vcmp.eq.s32.totalorder %v93, %v107
    %v109 = vsel %vm108, %v27, 128
    %v110 = vand.u32 %v109, 65535
    %v111 = vshra.s32 %v109, 16
    %v112 = vcvt.s32.f32 %v110
    %v113 = vcvt.s32.f32 %v111
    %114 = vmin.xlane.f32.xlu0 %v113
    %v115 = vpop.xlane.xlu0 %114
    %vm116 = vcmp.eq.f32.partialorder %v113, %v115
    %v117 = vsel %vm116, %v112, inf
    %118 = vmin.xlane.f32.xlu0 %v117
    %v119 = vpop.xlane.xlu0 %118
    %v120 = vcvt.f32.s32 %v119
    %v121 = vcvt.f32.s32 %v115
    %v122 = vshll.u32 %v121, 16
    %v123 = vadd.s32 %v122, %v120
    %vm124 = vcmp.eq.s32.totalorder %v27, %v123
    %v125 = vsel %vm124, 2147483648, %v93
    %v126 = vand.u32 %v125, 65535
    %v127 = vshra.s32 %v125, 16
    %v128 = vcvt.s32.f32 %v126
    %v129 = vcvt.s32.f32 %v127
    %130 = vmax.xlane.f32.xlu0 %v129
    %v131 = vpop.xlane.xlu0 %130
    %vm132 = vcmp.eq.f32.partialorder %v129, %v131
    %v133 = vsel %vm132, %v128, -inf
    %134 = vmax.xlane.f32.xlu0 %v133
    %v135 = vpop.xlane.xlu0 %134
    %v136 = vcvt.f32.s32 %v135
    %v137 = vcvt.f32.s32 %v131
    %v138 = vshll.u32 %v137, 16
    %v139 = vadd.s32 %v138, %v136
    %vm140 = vcmp.eq.s32.totalorder %v125, %v139
    %v141 = vsel %vm140, %v27, 128
    %v142 = vand.u32 %v141, 65535
    %v143 = vshra.s32 %v141, 16
    %v144 = vcvt.s32.f32 %v142
    %v145 = vcvt.s32.f32 %v143
    %146 = vmin.xlane.f32.xlu0 %v145
    %v147 = vpop.xlane.xlu0 %146
    %vm148 = vcmp.eq.f32.partialorder %v145, %v147
    %v149 = vsel %vm148, %v144, inf
    %150 = vmin.xlane.f32.xlu0 %v149
    %v151 = vpop.xlane.xlu0 %150
    %v152 = vcvt.f32.s32 %v151
    %v153 = vcvt.f32.s32 %v147
    %v154 = vshll.u32 %v153, 16
    %v155 = vadd.s32 %v154, %v152
    %vm156 = vcmp.eq.s32.totalorder %v27, %v155
    %v157 = vsel %vm156, 2147483648, %v125
    %v158 = vand.u32 %v157, 65535
    %v159 = vshra.s32 %v157, 16
    %v160 = vcvt.s32.f32 %v158
    %v161 = vcvt.s32.f32 %v159
    %162 = vmax.xlane.f32.xlu0 %v161
    %v163 = vpop.xlane.xlu0 %162
    %vm164 = vcmp.eq.f32.partialorder %v161, %v163
    %v165 = vsel %vm164, %v160, -inf
    %166 = vmax.xlane.f32.xlu0 %v165
    %v167 = vpop.xlane.xlu0 %166
    %v168 = vcvt.f32.s32 %v167
    %v169 = vcvt.f32.s32 %v163
    %v170 = vshll.u32 %v169, 16
    %v171 = vadd.s32 %v170, %v168
    %vm172 = vcmp.eq.s32.totalorder %v157, %v171
    %v173 = vsel %vm172, %v27, 128
    %v174 = vand.u32 %v173, 65535
    %v175 = vshra.s32 %v173, 16
    %v176 = vcvt.s32.f32 %v174
    %v177 = vcvt.s32.f32 %v175
    %178 = vmin.xlane.f32.xlu0 %v177
    %v179 = vpop.xlane.xlu0 %178
    %vm180 = vcmp.eq.f32.partialorder %v177, %v179
    %v181 = vsel %vm180, %v176, inf
    %182 = vmin.xlane.f32.xlu0 %v181
    %v183 = vpop.xlane.xlu0 %182
    %v184 = vcvt.f32.s32 %v183
    %v185 = vcvt.f32.s32 %v179
    %v186 = vshll.u32 %v185, 16
    %v187 = vadd.s32 %v186, %v184
    %vm188 = vcmp.eq.s32.totalorder %v27, %v187
    %v189 = vsel %vm188, 2147483648, %v157
    %v190 = vand.u32 %v189, 65535
    %v191 = vshra.s32 %v189, 16
    %v192 = vcvt.s32.f32 %v190
    %v193 = vcvt.s32.f32 %v191
    %194 = vmax.xlane.f32.xlu0 %v193
    %v195 = vpop.xlane.xlu0 %194
    %vm196 = vcmp.eq.f32.partialorder %v193, %v195
    %v197 = vsel %vm196, %v192, -inf
    %198 = vmax.xlane.f32.xlu0 %v197
    %v199 = vpop.xlane.xlu0 %198
    %v200 = vcvt.f32.s32 %v199
    %v201 = vcvt.f32.s32 %v195
    %v202 = vshll.u32 %v201, 16
    %v203 = vadd.s32 %v202, %v200
    %vm204 = vcmp.eq.s32.totalorder %v189, %v203
    %v205 = vsel %vm204, %v27, 128
    %v206 = vand.u32 %v205, 65535
    %v207 = vshra.s32 %v205, 16
    %v208 = vcvt.s32.f32 %v206
    %v209 = vcvt.s32.f32 %v207
    %210 = vmin.xlane.f32.xlu0 %v209
    %v211 = vpop.xlane.xlu0 %210
    %vm212 = vcmp.eq.f32.partialorder %v209, %v211
    %v213 = vsel %vm212, %v208, inf
    %214 = vmin.xlane.f32.xlu0 %v213
    %v215 = vpop.xlane.xlu0 %214
    %v216 = vcvt.f32.s32 %v215
    %v217 = vcvt.f32.s32 %v211
    %v218 = vshll.u32 %v217, 16
    %v219 = vadd.s32 %v218, %v216
    %vm220 = vcmp.eq.s32.totalorder %v27, %v219
    %v221 = vsel %vm220, 2147483648, %v189
    %v222 = vand.u32 %v221, 65535
    %v223 = vshra.s32 %v221, 16
    %v224 = vcvt.s32.f32 %v222
    %v225 = vcvt.s32.f32 %v223
    %226 = vmax.xlane.f32.xlu0 %v225
    %v227 = vpop.xlane.xlu0 %226
    %vm228 = vcmp.eq.f32.partialorder %v225, %v227
    %v229 = vsel %vm228, %v224, -inf
    %230 = vmax.xlane.f32.xlu0 %v229
    %v231 = vpop.xlane.xlu0 %230
    %v232 = vcvt.f32.s32 %v231
    %v233 = vcvt.f32.s32 %v227
    %v234 = vshll.u32 %v233, 16
    %v235 = vadd.s32 %v234, %v232
    %vm236 = vcmp.eq.s32.totalorder %v221, %v235
    %v237 = vsel %vm236, %v27, 128
    %v238 = vand.u32 %v237, 65535
    %v239 = vshra.s32 %v237, 16
    %v240 = vcvt.s32.f32 %v238
    %v241 = vcvt.s32.f32 %v239
    %242 = vmin.xlane.f32.xlu0 %v241
    %v243 = vpop.xlane.xlu0 %242
    %vm244 = vcmp.eq.f32.partialorder %v241, %v243
    %v245 = vsel %vm244, %v240, inf
    %246 = vmin.xlane.f32.xlu0 %v245
    %v247 = vpop.xlane.xlu0 %246
    %v248 = vcvt.f32.s32 %v247
    %v249 = vcvt.f32.s32 %v243
    %v250 = vshll.u32 %v249, 16
    %v251 = vadd.s32 %v250, %v248
    %vm252 = vcmp.eq.s32.totalorder %v27, %v251
    %v253 = vsel %vm252, 2147483648, %v221
    %v254 = vand.u32 %v253, 65535
    %v255 = vshra.s32 %v253, 16
    %v256 = vcvt.s32.f32 %v254
    %v257 = vcvt.s32.f32 %v255
    %258 = vmax.xlane.f32.xlu0 %v257
    %v259 = vpop.xlane.xlu0 %258
    %vm260 = vcmp.eq.f32.partialorder %v257, %v259
    %v261 = vsel %vm260, %v256, -inf
    %262 = vmax.xlane.f32.xlu0 %v261
    %v263 = vpop.xlane.xlu0 %262
    %v264 = vcvt.f32.s32 %v263
    %v265 = vcvt.f32.s32 %v259
    %v266 = vshll.u32 %v265, 16
    %v267 = vadd.s32 %v266, %v264
    %vm268 = vcmp.eq.s32.totalorder %v253, %v267
    %v269 = vsel %vm268, %v27, 128
    %v270 = vand.u32 %v269, 65535
    %v271 = vshra.s32 %v269, 16
    %v272 = vcvt.s32.f32 %v270
    %v273 = vcvt.s32.f32 %v271
    %274 = vmin.xlane.f32.xlu0 %v273
    %v275 = vpop.xlane.xlu0 %274
    %vm276 = vcmp.eq.f32.partialorder %v273, %v275
    %v277 = vsel %vm276, %v272, inf
    %278 = vmin.xlane.f32.xlu0 %v277
    %v279 = vpop.xlane.xlu0 %278
    %v280 = vcvt.f32.s32 %v279
    %v281 = vcvt.f32.s32 %v275
    %v282 = vshll.u32 %v281, 16
    %v283 = vadd.s32 %v282, %v280
    %vm284 = vcmp.eq.s32.totalorder %v27, %v283
    %v285 = vsel %vm284, 2147483648, %v253
    %v286 = vand.u32 %v285, 65535
    %v287 = vshra.s32 %v285, 16
    %v288 = vcvt.s32.f32 %v286
    %v289 = vcvt.s32.f32 %v287
    %290 = vmax.xlane.f32.xlu0 %v289
    %v291 = vpop.xlane.xlu0 %290
    %vm292 = vcmp.eq.f32.partialorder %v289, %v291
    %v293 = vsel %vm292, %v288, -inf
    %294 = vmax.xlane.f32.xlu0 %v293
    %v295 = vpop.xlane.xlu0 %294
    %v296 = vcvt.f32.s32 %v295
    %v297 = vcvt.f32.s32 %v291
    %v298 = vshll.u32 %v297, 16
    %v299 = vadd.s32 %v298, %v296
    %vm300 = vcmp.eq.s32.totalorder %v285, %v299
    %v301 = vsel %vm300, %v27, 128
    %v302 = vand.u32 %v301, 65535
    %v303 = vshra.s32 %v301, 16
    %v304 = vcvt.s32.f32 %v302
    %v305 = vcvt.s32.f32 %v303
    %306 = vmin.xlane.f32.xlu0 %v305
    %v307 = vpop.xlane.xlu0 %306
    %vm308 = vcmp.eq.f32.partialorder %v305, %v307
    %v309 = vsel %vm308, %v304, inf
    %310 = vmin.xlane.f32.xlu0 %v309
    %v311 = vpop.xlane.xlu0 %310
    %v312 = vcvt.f32.s32 %v311
    %v313 = vcvt.f32.s32 %v307
    %v314 = vshll.u32 %v313, 16
    %v315 = vadd.s32 %v314, %v312
    %vm316 = vcmp.eq.s32.totalorder %v27, %v315
    %v317 = vsel %vm316, 2147483648, %v285
    %v318 = vand.u32 %v317, 65535
    %v319 = vshra.s32 %v317, 16
    %v320 = vcvt.s32.f32 %v318
    %v321 = vcvt.s32.f32 %v319
    %322 = vmax.xlane.f32.xlu0 %v321
    %v323 = vpop.xlane.xlu0 %322
    %vm324 = vcmp.eq.f32.partialorder %v321, %v323
    %v325 = vsel %vm324, %v320, -inf
    %326 = vmax.xlane.f32.xlu0 %v325
    %v327 = vpop.xlane.xlu0 %326
    %v328 = vcvt.f32.s32 %v327
    %v329 = vcvt.f32.s32 %v323
    %v330 = vshll.u32 %v329, 16
    %v331 = vadd.s32 %v330, %v328
    %vm332 = vcmp.eq.s32.totalorder %v317, %v331
    %v333 = vsel %vm332, %v27, 128
    %v334 = vand.u32 %v333, 65535
    %v335 = vshra.s32 %v333, 16
    %v336 = vcvt.s32.f32 %v334
    %v337 = vcvt.s32.f32 %v335
    %338 = vmin.xlane.f32.xlu0 %v337
    %v339 = vpop.xlane.xlu0 %338
    %vm340 = vcmp.eq.f32.partialorder %v337, %v339
    %v341 = vsel %vm340, %v336, inf
    %342 = vmin.xlane.f32.xlu0 %v341
    %v343 = vpop.xlane.xlu0 %342
    %v344 = vcvt.f32.s32 %v343
    %v345 = vcvt.f32.s32 %v339
    %v346 = vshll.u32 %v345, 16
    %v347 = vadd.s32 %v346, %v344
    %vm348 = vcmp.eq.s32.totalorder %v27, %v347
    %v349 = vsel %vm348, 2147483648, %v317
    %v350 = vand.u32 %v349, 65535
    %v351 = vshra.s32 %v349, 16
    %v352 = vcvt.s32.f32 %v350
    %v353 = vcvt.s32.f32 %v351
    %354 = vmax.xlane.f32.xlu0 %v353
    %v355 = vpop.xlane.xlu0 %354
    %vm356 = vcmp.eq.f32.partialorder %v353, %v355
    %v357 = vsel %vm356, %v352, -inf
    %358 = vmax.xlane.f32.xlu0 %v357
    %v359 = vpop.xlane.xlu0 %358
    %v360 = vcvt.f32.s32 %v359
    %v361 = vcvt.f32.s32 %v355
    %v362 = vshll.u32 %v361, 16
    %v363 = vadd.s32 %v362, %v360
    %vm364 = vcmp.eq.s32.totalorder %v349, %v363
    %v365 = vsel %vm364, %v27, 128
    %v366 = vand.u32 %v365, 65535
    %v367 = vshra.s32 %v365, 16
    %v368 = vcvt.s32.f32 %v366
    %v369 = vcvt.s32.f32 %v367
    %370 = vmin.xlane.f32.xlu0 %v369
    %v371 = vpop.xlane.xlu0 %370
    %vm372 = vcmp.eq.f32.partialorder %v369, %v371
    %v373 = vsel %vm372, %v368, inf
    %374 = vmin.xlane.f32.xlu0 %v373
    %v375 = vpop.xlane.xlu0 %374
    %v376 = vcvt.f32.s32 %v375
    %v377 = vcvt.f32.s32 %v371
    %v378 = vshll.u32 %v377, 16
    %v379 = vadd.s32 %v378, %v376
    %vm380 = vcmp.eq.s32.totalorder %v27, %v379
    %v381 = vsel %vm380, 2147483648, %v349
    %v382 = vand.u32 %v381, 65535
    %v383 = vshra.s32 %v381, 16
    %v384 = vcvt.s32.f32 %v382
    %v385 = vcvt.s32.f32 %v383
    %386 = vmax.xlane.f32.xlu0 %v385
    %v387 = vpop.xlane.xlu0 %386
    %vm388 = vcmp.eq.f32.partialorder %v385, %v387
    %v389 = vsel %vm388, %v384, -inf
    %390 = vmax.xlane.f32.xlu0 %v389
    %v391 = vpop.xlane.xlu0 %390
    %v392 = vcvt.f32.s32 %v391
    %v393 = vcvt.f32.s32 %v387
    %v394 = vshll.u32 %v393, 16
    %v395 = vadd.s32 %v394, %v392
    %vm396 = vcmp.eq.s32.totalorder %v381, %v395
    %v397 = vsel %vm396, %v27, 128
    %v398 = vand.u32 %v397, 65535
    %v399 = vshra.s32 %v397, 16
    %v400 = vcvt.s32.f32 %v398
    %v401 = vcvt.s32.f32 %v399
    %402 = vmin.xlane.f32.xlu0 %v401
    %v403 = vpop.xlane.xlu0 %402
    %vm404 = vcmp.eq.f32.partialorder %v401, %v403
    %v405 = vsel %vm404, %v400, inf
    %406 = vmin.xlane.f32.xlu0 %v405
    %v407 = vpop.xlane.xlu0 %406
    %v408 = vcvt.f32.s32 %v407
    %v409 = vcvt.f32.s32 %v403
    %v410 = vshll.u32 %v409, 16
    %v411 = vadd.s32 %v410, %v408
    %vm412 = vcmp.eq.s32.totalorder %v27, %v411
    %v413 = vsel %vm412, 2147483648, %v381
    %v414 = vand.u32 %v413, 65535
    %v415 = vshra.s32 %v413, 16
    %v416 = vcvt.s32.f32 %v414
    %v417 = vcvt.s32.f32 %v415
    %418 = vmax.xlane.f32.xlu0 %v417
    %v419 = vpop.xlane.xlu0 %418
    %vm420 = vcmp.eq.f32.partialorder %v417, %v419
    %v421 = vsel %vm420, %v416, -inf
    %422 = vmax.xlane.f32.xlu0 %v421
    %v423 = vpop.xlane.xlu0 %422
    %v424 = vcvt.f32.s32 %v423
    %v425 = vcvt.f32.s32 %v419
    %v426 = vshll.u32 %v425, 16
    %v427 = vadd.s32 %v426, %v424
    %vm428 = vcmp.eq.s32.totalorder %v413, %v427
    %v429 = vsel %vm428, %v27, 128
    %v430 = vand.u32 %v429, 65535
    %v431 = vshra.s32 %v429, 16
    %v432 = vcvt.s32.f32 %v430
    %v433 = vcvt.s32.f32 %v431
    %434 = vmin.xlane.f32.xlu0 %v433
    %v435 = vpop.xlane.xlu0 %434
    %vm436 = vcmp.eq.f32.partialorder %v433, %v435
    %v437 = vsel %vm436, %v432, inf
    %438 = vmin.xlane.f32.xlu0 %v437
    %v439 = vpop.xlane.xlu0 %438
    %v440 = vcvt.f32.s32 %v439
    %v441 = vcvt.f32.s32 %v435
    %v442 = vshll.u32 %v441, 16
    %v443 = vadd.s32 %v442, %v440
    %vm444 = vcmp.eq.s32.totalorder %v27, %v443
    %v445 = vsel %vm444, 2147483648, %v413
    %v446 = vand.u32 %v445, 65535
    %v447 = vshra.s32 %v445, 16
    %v448 = vcvt.s32.f32 %v446
    %v449 = vcvt.s32.f32 %v447
    %450 = vmax.xlane.f32.xlu0 %v449
    %v451 = vpop.xlane.xlu0 %450
    %vm452 = vcmp.eq.f32.partialorder %v449, %v451
    %v453 = vsel %vm452, %v448, -inf
    %454 = vmax.xlane.f32.xlu0 %v453
    %v455 = vpop.xlane.xlu0 %454
    %v456 = vcvt.f32.s32 %v455
    %v457 = vcvt.f32.s32 %v451
    %v458 = vshll.u32 %v457, 16
    %v459 = vadd.s32 %v458, %v456
    %vm460 = vcmp.eq.s32.totalorder %v445, %v459
    %v461 = vsel %vm460, %v27, 128
    %v462 = vand.u32 %v461, 65535
    %v463 = vshra.s32 %v461, 16
    %v464 = vcvt.s32.f32 %v462
    %v465 = vcvt.s32.f32 %v463
    %466 = vmin.xlane.f32.xlu0 %v465
    %v467 = vpop.xlane.xlu0 %466
    %vm468 = vcmp.eq.f32.partialorder %v465, %v467
    %v469 = vsel %vm468, %v464, inf
    %470 = vmin.xlane.f32.xlu0 %v469
    %v471 = vpop.xlane.xlu0 %470
    %v472 = vcvt.f32.s32 %v471
    %v473 = vcvt.f32.s32 %v467
    %v474 = vshll.u32 %v473, 16
    %v475 = vadd.s32 %v474, %v472
    %vm476 = vcmp.eq.s32.totalorder %v27, %v475
    %v477 = vsel %vm476, 2147483648, %v445
    %v478 = vand.u32 %v477, 65535
    %v479 = vshra.s32 %v477, 16
    %v480 = vcvt.s32.f32 %v478
    %v481 = vcvt.s32.f32 %v479
    %482 = vmax.xlane.f32.xlu0 %v481
    %v483 = vpop.xlane.xlu0 %482
    %vm484 = vcmp.eq.f32.partialorder %v481, %v483
    %v485 = vsel %vm484, %v480, -inf
    %486 = vmax.xlane.f32.xlu0 %v485
    %v487 = vpop.xlane.xlu0 %486
    %v488 = vcvt.f32.s32 %v487
    %v489 = vcvt.f32.s32 %v483
    %v490 = vshll.u32 %v489, 16
    %v491 = vadd.s32 %v490, %v488
    %vm492 = vcmp.eq.s32.totalorder %v477, %v491
    %v493 = vsel %vm492, %v27, 128
    %v494 = vand.u32 %v493, 65535
    %v495 = vshra.s32 %v493, 16
    %v496 = vcvt.s32.f32 %v494
    %v497 = vcvt.s32.f32 %v495
    %498 = vmin.xlane.f32.xlu0 %v497
    %v499 = vpop.xlane.xlu0 %498
    %vm500 = vcmp.eq.f32.partialorder %v497, %v499
    %v501 = vsel %vm500, %v496, inf
    %502 = vmin.xlane.f32.xlu0 %v501
    %v503 = vpop.xlane.xlu0 %502
    %v504 = vcvt.f32.s32 %v503
    %v505 = vcvt.f32.s32 %v499
    %v506 = vshll.u32 %v505, 16
    %v507 = vadd.s32 %v506, %v504
    %vm508 = vcmp.eq.s32.totalorder %v27, %v507
    %v509 = vsel %vm508, 2147483648, %v477
    %v510 = vand.u32 %v509, 65535
    %v511 = vshra.s32 %v509, 16
    %v512 = vcvt.s32.f32 %v510
    %v513 = vcvt.s32.f32 %v511
    %514 = vmax.xlane.f32.xlu0 %v513
    %v515 = vpop.xlane.xlu0 %514
    %vm516 = vcmp.eq.f32.partialorder %v513, %v515
    %v517 = vsel %vm516, %v512, -inf
    %518 = vmax.xlane.f32.xlu0 %v517
    %v519 = vpop.xlane.xlu0 %518
    %v520 = vcvt.f32.s32 %v519
    %v521 = vcvt.f32.s32 %v515
    %v522 = vshll.u32 %v521, 16
    %v523 = vadd.s32 %v522, %v520
    %vm524 = vcmp.eq.s32.totalorder %v509, %v523
    %v525 = vsel %vm524, %v27, 128
    %v526 = vand.u32 %v525, 65535
    %v527 = vshra.s32 %v525, 16
    %v528 = vcvt.s32.f32 %v526
    %v529 = vcvt.s32.f32 %v527
    %530 = vmin.xlane.f32.xlu0 %v529
    %v531 = vpop.xlane.xlu0 %530
    %vm532 = vcmp.eq.f32.partialorder %v529, %v531
    %v533 = vsel %vm532, %v528, inf
    %534 = vmin.xlane.f32.xlu0 %v533
    %v535 = vpop.xlane.xlu0 %534
    %v536 = vcvt.f32.s32 %v535
    %v537 = vcvt.f32.s32 %v531
    %v538 = vshll.u32 %v537, 16
    %v539 = vadd.s32 %v538, %v536
    %vm540 = vcmp.eq.s32.totalorder %v27, %v539
    %v541 = vsel %vm540, 2147483648, %v509
    %vm542 = vcmp.eq.s32.totalorder %v541, 2147483648
    %v543 = vsel %vm542, %v21, 0.0
    %544 = vst [vmem:[#allocation5] sm:$0xff] %v543
    // Predicated region
    $region10: #{tpu_custom_call.1} parent=1 // pred_check
      _
    $region11: #{tpu_custom_call.1} parent=1 // pred_check_branch
      %546 = sbr.rel (0) target = $region13
    $region12: #{tpu_custom_call.1} parent=1 // pred_region
      %s548 = ssub.s32 128, 128
      %549 = vsyncadd [#allocation4], %s548
      %s551 = sshll.u32 [#allocation5], 4
      %s552 = int_to_ptr.vmem [resolvable:$true] %s551
      %554 = dma.vmem_to_hbm [thread:$0]  %s552, 128, %s1, [#allocation4]
    $region13: #{tpu_custom_call.1} parent=1 // pred_fallthru
      _
    // Predicated region
    $region14: #{tpu_custom_call.1} parent=1 // pred_check
      _
    $region15: #{tpu_custom_call.1} parent=1 // pred_check_branch
      %556 = sbr.rel (0) target = $region17
    $region16: #{tpu_custom_call.1} parent=1 // pred_region
      %557 = dma.done [#allocation4], 128
    $region17: #{tpu_custom_call.1} parent=1 // pred_fallthru
      _
    %558 = vsyncpa [#allocation3], 1
    %559 = vsyncpa [#allocation4], 1

</llo_original>
